<compile_context>
chip_gen: v7x
topology: tpu7x:2x2x1
jax: 0.10.0
libtpu: 0.0.40
codegen_flags: <defaults>
</compile_context>

<pallas_src>
import jax
import jax.numpy as jnp
from jax.experimental import pallas as pl
from jax.experimental.pallas import tpu as pltpu

_LANES = 128
_NEG_BIG = -1e30  # padded-logit bias: exp(_NEG_BIG - max) underflows to exactly 0


def _round_up(n, m):
    return ((n + m - 1) // m) * m


def _vmem_capacity_bytes():
    """Per-core VMEM capacity (capability probe; never masks kernel errors)."""
    try:
        return int(pltpu.get_tpu_info().vmem_capacity_bytes)
    except Exception:
        pass
    try:
        kind = jax.devices()[0].device_kind.lower()
    except Exception:
        kind = ""
    if any(t in kind for t in ("v4", "v5", "v6")):
        return 128 << 20
    return 64 << 20  # conservative default (v7x: 64 MiB per TensorCore)


def _footprint(tile_m, tile_k, cout_p, grid_k, in_b, out_b, single_buffer):
    """Steady-state VMEM bytes for one grid step (all pipeline buffers)."""
    w_bufs = 1 if (single_buffer and grid_k == 1) else 2   # resident weight: 1 buf
    b_bufs = 1 if single_buffer else 2                     # constant bias: 1 buf
    return (2 * tile_m * tile_k * in_b          # double-buffered x tiles
            + w_bufs * tile_k * cout_p * in_b   # weight tile(s)
            + b_bufs * cout_p * 4               # bias row (f32)
            + 2 * tile_m * cout_p * out_b       # double-buffered output tiles
            + tile_m * cout_p * 4               # f32 accumulator scratch
            + 2 * tile_m * cout_p * 4)          # headroom for epilogue temporaries


def _divisor_tile_k(cin, pref_tk):
    """Largest multiple-of-128 divisor of cin (cin % 128 == 0) that is <= pref_tk."""
    start = max(_LANES, (min(pref_tk, cin) // _LANES) * _LANES)
    for tk in range(start, 0, -_LANES):
        if cin % tk == 0:
            return tk
    return cin


def _select_tiling(n_rows, cin, cout_p, in_b, out_b, capacity, single_buffer):
    """Pick (tile_m, tile_k, grid_k, footprint) that fits ~75% of VMEM."""
    granule = {1: 32, 2: 16}.get(in_b, 8)       # sublane packing granule per dtype
    budget = (capacity * 3) // 4
    big_vmem = capacity >= (96 << 20)           # v5e/v6e: 128 MiB; v7x: 64 MiB
    pref_tm = 512 if big_vmem else 256
    pref_tk = 512 if big_vmem else 256

    tm = _round_up(max(granule, min(pref_tm, n_rows)), granule)
    while True:
        # (a) resident weight (grid_k == 1): weight is read from HBM once per
        #     TensorCore instead of once per M tile -- strongly preferred,
        #     especially on dual-TC v7x where streaming doubles weight reads.
        fp = _footprint(tm, cin, cout_p, 1, in_b, out_b, single_buffer)
        if fp <= budget:
            return tm, cin, 1, fp
        # (b) stream the weight over bounded K tiles (multiples of 128 lanes).
        tk_eff = cin
        if cin % _LANES == 0 and cin > _LANES:
            tk = pref_tk
            while True:
                tk_eff = _divisor_tile_k(cin, tk)
                fp = _footprint(tm, tk_eff, cout_p, cin // tk_eff, in_b, out_b,
                                single_buffer)
                if fp <= budget or tk <= _LANES:
                    break
                tk = max(_LANES, tk // 2)
            if fp <= budget:
                return tm, tk_eff, cin // tk_eff, fp
        # (c) shrink the row tile and retry (keeps residency alive if possible).
        if tm <= max(granule, 64):
            # TODO(synk): online-LSE Cout tiling for heads that still do not fit.
            return tm, tk_eff, max(1, cin // tk_eff), fp
        tm = _round_up(max(granule, tm // 2), granule)


def prepare_params(weight, bias, *, compute_dtype=None):
    """One-time weight/bias preprocessing (hoisted out of the per-call path).

    weight: [Cout, Cin] (PyTorch nn.Linear layout), bias: [Cout].
    Returns (wt [Cin_p, Cout_p], bias2 [1, Cout_p] f32, Cout).
      * Cout is padded to a multiple of 128 lanes (zero weight columns, -1e30
        bias) so the output store / softmax work is full-vreg; padded columns
        vanish in the log-softmax and are sliced off by the wrapper.
      * Cin is zero-padded to a multiple of 128 when needed so K streaming can
        always use bounded tiles (zero rows contribute nothing).
      * compute_dtype=jnp.bfloat16 is recommended on v6e/v7x (native MXU input,
        halves weight HBM traffic); accumulation and epilogue stay f32.
    """
    cout, cin = weight.shape
    cout_p = _round_up(cout, _LANES)
    cin_p = _round_up(cin, _LANES) if cin > _LANES else cin

    wt = weight.T.astype(compute_dtype if compute_dtype is not None else weight.dtype)
    if cout_p != cout or cin_p != cin:
        wt = jnp.pad(wt, ((0, cin_p - cin), (0, cout_p - cout)))
    bias_f32 = bias.astype(jnp.float32)
    if cout_p != cout:
        bias_f32 = jnp.pad(bias_f32, (0, cout_p - cout), constant_values=_NEG_BIG)
    return wt, bias_f32.reshape(1, cout_p), cout


def _mlp_log_softmax_kernel(x_ref, wt_ref, b_ref, o_ref, acc_ref):
    k = pl.program_id(1)

    @pl.when(k == 0)
    def _init():
        acc_ref[...] = jnp.zeros_like(acc_ref)

    # MXU matmul, f32 accumulation into the resident scratch accumulator.
    acc_ref[...] += jnp.dot(x_ref[...], wt_ref[...],
                            preferred_element_type=jnp.float32)

    @pl.when(k == pl.num_programs(1) - 1)
    def _finalize():
        # Bias add in place on the accumulator, then log-softmax from it
        # (minimizes extra (tile_m, Cout_p) f32 temporaries in the epilogue).
        acc_ref[...] += b_ref[...]
        z = acc_ref[...]
        m = jnp.max(z, axis=-1, keepdims=True)        # row reduction (XLU)
        s = z - m
        lse = jnp.log(jnp.sum(jnp.exp(s), axis=-1, keepdims=True))  # EUP exp/log
        o_ref[...] = (s - lse).astype(o_ref.dtype)


def mlp_log_softmax(x, wt, bias2, out_channels, *, out_dtype=None, interpret=False):
    """log_softmax(x @ W^T + b, axis=-1) with (wt, bias2) from prepare_params."""
    *lead, cin = x.shape
    cin_p, cout_p = wt.shape
    out_dtype = out_dtype if out_dtype is not None else x.dtype

    x2 = x.reshape(-1, cin).astype(wt.dtype)
    if cin_p != cin:                      # match the prepared (128-padded) Cin
        x2 = jnp.pad(x2, ((0, 0), (0, cin_p - cin)))
    n_rows = x2.shape[0]

    in_b = jnp.dtype(wt.dtype).itemsize
    out_b = jnp.dtype(out_dtype).itemsize
    capacity = _vmem_capacity_bytes()
    single_buffer = hasattr(pl, "Buffered")   # pure capability check, no try/except

    tile_m, tile_k, grid_k, fp = _select_tiling(
        n_rows, cin_p, cout_p, in_b, out_b, capacity, single_buffer)
    grid_m = pl.cdiv(n_rows, tile_m)          # ragged last M tile: Pallas masks the
                                              # partial store; garbage rows are
                                              # independent and never written back.
    vmem_limit = int(min(capacity - (4 << 20), max(fp + (8 << 20), 32 << 20)))

    # Constant blocks (bias; weight when resident) need no double-buffering.
    w_mode = dict(pipeline_mode=pl.Buffered(1)) if (single_buffer and grid_k == 1) else {}
    b_mode = dict(pipeline_mode=pl.Buffered(1)) if single_buffer else {}

    grid_spec = pltpu.PrefetchScalarGridSpec(
        num_scalar_prefetch=0,
        grid=(grid_m, grid_k),
        in_specs=[
            pl.BlockSpec((tile_m, tile_k), lambda i, k: (i, k)),
            pl.BlockSpec((tile_k, cout_p), lambda i, k: (k, 0), **w_mode),
            pl.BlockSpec((1, cout_p), lambda i, k: (0, 0), **b_mode),
        ],
        out_specs=pl.BlockSpec((tile_m, cout_p), lambda i, k: (i, 0)),
        scratch_shapes=[pltpu.VMEM((tile_m, cout_p), jnp.float32)],
    )

    out2 = pl.pallas_call(
        _mlp_log_softmax_kernel,
        out_shape=jax.ShapeDtypeStruct((n_rows, cout_p), out_dtype),
        grid_spec=grid_spec,
        # Row axis parallel (megacore / dual-TC v7x); K reduction arbitrary.
        compiler_params=pltpu.CompilerParams(
            dimension_semantics=("parallel", "arbitrary"),
            vmem_limit_bytes=vmem_limit),
        interpret=interpret,
    )(x2, wt, bias2)

    return out2[:, :out_channels].reshape(*lead, out_channels)


def mlp_linear_forward(x, weight, bias, *, compute_dtype=None, out_dtype=None,
                       interpret=False):
    """Convenience wrapper matching MLPLinear.forward (prep done per call).

    For repeated inference, call prepare_params() once and mlp_log_softmax()
    per step so the weight transpose/pad is not paid every forward.
    """
    wt, b2, cout = prepare_params(weight, bias, compute_dtype=compute_dtype)
    return mlp_log_softmax(x, wt, b2, cout, out_dtype=out_dtype, interpret=interpret)


if __name__ == "__main__":
    key = jax.random.PRNGKey(0)
    k_x, k_w, k_b = jax.random.split(key, 3)

    # Small shapes consistent with MLPLinear(in_channels, out_channels):
    # x: [batch, seq, in_channels] -> log-probs over out_channels.
    B, S, Cin, Cout = 2, 8, 32, 16
    x = jax.random.normal(k_x, (B, S, Cin), dtype=jnp.float32)

    # torch.nn.Linear default init: U(-1/sqrt(Cin), 1/sqrt(Cin)).
    bound = 1.0 / (Cin ** 0.5)
    weight = jax.random.uniform(k_w, (Cout, Cin), minval=-bound, maxval=bound,
                                dtype=jnp.float32)
    bias = jax.random.uniform(k_b, (Cout,), minval=-bound, maxval=bound,
                              dtype=jnp.float32)

    ref = jax.nn.log_softmax(jnp.einsum("bsc,oc->bso", x, weight) + bias, axis=-1)

    # --- f32 MXU path (exact check) --------------------------------------
    wt32, b32, _ = prepare_params(weight, bias)            # one-time prep
    fwd32 = jax.jit(lambda xx: mlp_log_softmax(xx, wt32, b32, Cout))
    out = jax.block_until_ready(fwd32(x))
    assert out.shape == ref.shape
    assert jnp.allclose(out, ref, atol=1e-5, rtol=1e-5), "f32 mismatch vs reference"

    # --- bf16 MXU path (recommended on v6e/v7x; f32 accumulation/epilogue) -
    wt16, b16, _ = prepare_params(weight, bias, compute_dtype=jnp.bfloat16)
    fwd16 = jax.jit(lambda xx: mlp_log_softmax(xx, wt16, b16, Cout,
                                               out_dtype=jnp.float32))
    out16 = jax.block_until_ready(fwd16(x))
    assert jnp.allclose(out16, ref, atol=3e-2, rtol=3e-2), "bf16 mismatch vs reference"

    print("KERNEL_OK")
</pallas_src>

<mosaic_0001>
module attributes {stable_mosaic.version = 11 : i64} {
  func.func @_mlp_log_softmax_kernel(%arg0: i32, %arg1: i32, %arg2: memref<16x32xf32, #tpu.memory_space<vmem>>, %arg3: memref<32x128xf32, #tpu.memory_space<vmem>>, %arg4: memref<1x128xf32, #tpu.memory_space<vmem>>, %arg5: memref<16x128xf32, #tpu.memory_space<vmem>>, %arg6: memref<16x128xf32, #tpu.memory_space<vmem>>) attributes {dimension_semantics = [#tpu.dimension_semantics<parallel>, #tpu.dimension_semantics<arbitrary>], iteration_bounds = array<i64: 1, 1>, scalar_prefetch = 0 : i64, scratch_operands = 1 : i64, tpu.core_type = #tpu.core_type<tc>, window_params = [{transform_indices = @transform_0, window_bounds = array<i64: 16, 32>}, {pipeline_mode = #tpu.pipeline_mode<synchronous>, transform_indices = @transform_1, window_bounds = array<i64: 32, 128>}, {pipeline_mode = #tpu.pipeline_mode<synchronous>, transform_indices = @transform_2, window_bounds = array<i64: 1, 128>}, {transform_indices = @transform_3, window_bounds = array<i64: 16, 128>}]} {
    %c0_i32 = arith.constant 0 : i32
    %0 = arith.cmpi eq, %arg1, %c0_i32 : i32
    %1 = arith.extui %0 : i1 to i32
    %c0_i32_0 = arith.constant 0 : i32
    %2 = arith.cmpi ne, %1, %c0_i32_0 : i32
    scf.if %2 {
      %cst_10 = arith.constant 0.000000e+00 : f32
      %12 = vector.broadcast %cst_10 : f32 to vector<16x128xf32>
      %c0_11 = arith.constant 0 : index
      %c0_12 = arith.constant 0 : index
      %13 = vector.load %arg6[%c0_11, %c0_12] : memref<16x128xf32, #tpu.memory_space<vmem>>, vector<16x128xf32>
      tpu.vector_store %arg6[%c0_11, %c0_12], %12 {strides = array<i32>} : memref<16x128xf32, #tpu.memory_space<vmem>>, vector<16x128xf32>,
    } else {
    }
    %c0 = arith.constant 0 : index
    %c0_1 = arith.constant 0 : index
    %3 = vector.load %arg6[%c0, %c0_1] : memref<16x128xf32, #tpu.memory_space<vmem>>, vector<16x128xf32>
    %c0_2 = arith.constant 0 : index
    %c0_3 = arith.constant 0 : index
    %4 = vector.load %arg2[%c0_2, %c0_3] : memref<16x32xf32, #tpu.memory_space<vmem>>, vector<16x32xf32>
    %c0_4 = arith.constant 0 : index
    %c0_5 = arith.constant 0 : index
    %5 = vector.load %arg3[%c0_4, %c0_5] : memref<32x128xf32, #tpu.memory_space<vmem>>, vector<32x128xf32>
    %cst = arith.constant dense<0.000000e+00> : vector<16x128xf32>
    %6 = tpu.matmul %4, %5, %cst {dimension_numbers = #tpu.dot_dimension_numbers<[1], [0], [0], [1], [0, 0, 1, 1], [], []>} : vector<16x32xf32>, vector<32x128xf32>, vector<16x128xf32> -> vector<16x128xf32>
    %7 = arith.addf %3, %6 : vector<16x128xf32>
    %c0_6 = arith.constant 0 : index
    %c0_7 = arith.constant 0 : index
    %8 = vector.load %arg6[%c0_6, %c0_7] : memref<16x128xf32, #tpu.memory_space<vmem>>, vector<16x128xf32>
    tpu.vector_store %arg6[%c0_6, %c0_7], %7 {strides = array<i32>} : memref<16x128xf32, #tpu.memory_space<vmem>>, vector<16x128xf32>,
    %c0_i32_8 = arith.constant 0 : i32
    %9 = arith.cmpi eq, %arg1, %c0_i32_8 : i32
    %10 = arith.extui %9 : i1 to i32
    %c0_i32_9 = arith.constant 0 : i32
    %11 = arith.cmpi ne, %10, %c0_i32_9 : i32
    scf.if %11 {
      %c0_10 = arith.constant 0 : index
      %c0_11 = arith.constant 0 : index
      %12 = vector.load %arg6[%c0_10, %c0_11] : memref<16x128xf32, #tpu.memory_space<vmem>>, vector<16x128xf32>
      %c0_12 = arith.constant 0 : index
      %c0_13 = arith.constant 0 : index
      %13 = vector.load %arg4[%c0_12, %c0_13] : memref<1x128xf32, #tpu.memory_space<vmem>>, vector<1x128xf32>
      %14 = vector.broadcast %13 : vector<1x128xf32> to vector<16x128xf32>
      %15 = arith.addf %12, %14 : vector<16x128xf32>
      %c0_14 = arith.constant 0 : index
      %c0_15 = arith.constant 0 : index
      %16 = vector.load %arg6[%c0_14, %c0_15] : memref<16x128xf32, #tpu.memory_space<vmem>>, vector<16x128xf32>
      tpu.vector_store %arg6[%c0_14, %c0_15], %15 {strides = array<i32>} : memref<16x128xf32, #tpu.memory_space<vmem>>, vector<16x128xf32>,
      %c0_16 = arith.constant 0 : index
      %c0_17 = arith.constant 0 : index
      %17 = vector.load %arg6[%c0_16, %c0_17] : memref<16x128xf32, #tpu.memory_space<vmem>>, vector<16x128xf32>
      %cst_18 = arith.constant dense<0xFF800000> : vector<16xf32>
      %18 = vector.multi_reduction <maximumf>, %17, %cst_18 [1] : vector<16x128xf32> to vector<16xf32>
      %19 = vector.shape_cast %18 : vector<16xf32> to vector<16x1xf32>
      %20 = vector.broadcast %19 : vector<16x1xf32> to vector<16x128xf32>
      %21 = arith.subf %17, %20 : vector<16x128xf32>
      %22 = math.exp %21 : vector<16x128xf32>
      %cst_19 = arith.constant dense<0.000000e+00> : vector<16xf32>
      %23 = vector.multi_reduction <add>, %22, %cst_19 [1] : vector<16x128xf32> to vector<16xf32>
      %24 = vector.shape_cast %23 : vector<16xf32> to vector<16x1xf32>
      %25 = math.log %24 : vector<16x1xf32>
      %26 = vector.broadcast %25 : vector<16x1xf32> to vector<16x128xf32>
      %27 = arith.subf %21, %26 : vector<16x128xf32>
      %c0_20 = arith.constant 0 : index
      %c0_21 = arith.constant 0 : index
      %28 = vector.load %arg5[%c0_20, %c0_21] : memref<16x128xf32, #tpu.memory_space<vmem>>, vector<16x128xf32>
      tpu.vector_store %arg5[%c0_20, %c0_21], %27 {strides = array<i32>} : memref<16x128xf32, #tpu.memory_space<vmem>>, vector<16x128xf32>,
    } else {
    }
    return
  }
  func.func @transform_0(%arg0: i32, %arg1: i32) -> (i32, i32) {
    %c0_i32 = arith.constant 0 : i32
    return %arg0, %arg1 : i32, i32
  }
  func.func @transform_1(%arg0: i32, %arg1: i32) -> (i32, i32) {
    %c0_i32 = arith.constant 0 : i32
    %c0_i32_0 = arith.constant 0 : i32
    return %arg1, %c0_i32 : i32, i32
  }
  func.func @transform_2(%arg0: i32, %arg1: i32) -> (i32, i32) {
    %c0_i32 = arith.constant 0 : i32
    %c0_i32_0 = arith.constant 0 : i32
    %c0_i32_1 = arith.constant 0 : i32
    return %c0_i32, %c0_i32_0 : i32, i32
  }
  func.func @transform_3(%arg0: i32, %arg1: i32) -> (i32, i32) {
    %c0_i32 = arith.constant 0 : i32
    %c0_i32_0 = arith.constant 0 : i32
    return %arg0, %c0_i32 : i32, i32
  }
}

</mosaic_0001>

<llo_original>
// kernel: _lambda_.1
$region0: #{_lambda_.1}
  #allocation0 [shape = 'u32[]', space=smem, size = 0x4, offset = 0x4, fixed_abs, tag = 'smem constant byte address 0x4 - core index']
  #allocation1 [shape = 'u32[144,128]{1,0:T(1,128)}', space=vmem, size = 0x12000, scoped, tag = 'internal scratch']
  #allocation2 [shape = 'f32[16,128]{1,0:T(8,128)}', space=vmem, size = 0x2000, scoped, tag = 'scratch operand']
  %s0 = inlined_call_operand.hbm [shape: f32[16,32], index: 0, kind: input, shape index: {}]
  %s1 = inlined_call_operand.hbm [shape: f32[32,128], index: 1, kind: input, shape index: {}]
  %s2 = inlined_call_operand.vmem [shape: f32[1,128], index: 2, kind: input, shape index: {}]
  %s3 = inlined_call_operand.vmem [shape: f32[16,128], index: 3, kind: output, shape index: {}]
  %s4 = sld [smem:[#allocation0]]
  $region38: #{_lambda_.1} parent=0
    _
  %s6 = ssub.s32 1, %s4
  %s7 = scalar_select 0, %s6, %s4
  $region1: #{_lambda_.1} parent=0
    #allocation3 [shape = 'u8[8192]{0}', space=vmem, size = 0x2000, scoped, tag = 'input window, operand 0, single buffered']
    #allocation4 [shape = 's32[1]{0}', space=sflag, size = 0x4, scoped, tag = 'scoped memory for _lambda_.1']
    #allocation5 [shape = 'u8[16384]{0}', space=vmem, size = 0x4000, scoped, tag = 'input window, operand 1, single buffered']
    #allocation6 [shape = 's32[1]{0}', space=sflag, size = 0x4, scoped, tag = 'scoped memory for _lambda_.1']
    %8 = vsyncpa [#allocation4], 0
    %9 = vsyncpa [#allocation6], 0
    // Predicated region
    $region2: #{_lambda_.1} parent=1 // pred_check
      _
    $region3: #{_lambda_.1} parent=1 // pred_check_branch
      %11 = sbr.rel (0) target = $region5
    $region4: #{_lambda_.1} parent=1 // pred_region
      %s13 = ssub.s32 256, 256
      %14 = vsyncadd [#allocation4], %s13
      %s15 = sshll.u32 [#allocation3], 4
      %s16 = int_to_ptr.vmem [resolvable:$true] %s15
      %21 = dma.hbm_to_vmem [thread:$0]  %s0, 256, %s16, [#allocation4], 128, 128, 8
    $region5: #{_lambda_.1} parent=1 // pred_fallthru
      _
    // Predicated region
    $region6: #{_lambda_.1} parent=1 // pred_check
      _
    $region7: #{_lambda_.1} parent=1 // pred_check_branch
      %23 = sbr.rel (0) target = $region9
    $region8: #{_lambda_.1} parent=1 // pred_region
      %s25 = ssub.s32 512, 512
      %26 = vsyncadd [#allocation6], %s25
      %s27 = sshll.u32 [#allocation5], 4
      %s28 = int_to_ptr.vmem [resolvable:$true] %s27
      %33 = dma.hbm_to_vmem [thread:$0]  %s1, 512, %s28, [#allocation6], 128, 128, 8
    $region9: #{_lambda_.1} parent=1 // pred_fallthru
      _
    // Predicated region
    $region10: #{_lambda_.1} parent=1 // pred_check
      _
    $region11: #{_lambda_.1} parent=1 // pred_check_branch
      %35 = sbr.rel (0) target = $region13
    $region12: #{_lambda_.1} parent=1 // pred_region
      _
    $region13: #{_lambda_.1} parent=1 // pred_fallthru
      _
    // Predicated region
    $region14: #{_lambda_.1} parent=1 // pred_check
      _
    $region15: #{_lambda_.1} parent=1 // pred_check_branch
      %37 = sbr.rel (0) target = $region17
    $region16: #{_lambda_.1} parent=1 // pred_region
      %38 = dma.done [#allocation4], 256
    $region17: #{_lambda_.1} parent=1 // pred_fallthru
      _
    // Predicated region
    $region18: #{_lambda_.1} parent=1 // pred_check
      _
    $region19: #{_lambda_.1} parent=1 // pred_check_branch
      %40 = sbr.rel (0) target = $region21
    $region20: #{_lambda_.1} parent=1 // pred_region
      %41 = dma.done [#allocation6], 512
    $region21: #{_lambda_.1} parent=1 // pred_fallthru
      _
    %p42 = scmp.eq.s32.totalorder 0, 0
    // Predicated region
    $region22: #{_lambda_.1} parent=1 // pred_check
      %p43 = pneg %p42
    $region23: #{_lambda_.1} parent=1 // pred_check_branch
      %45 = sbr.rel (%p43) target = $region25
    $region24: #{_lambda_.1} parent=1 // pred_region
      %46 = vst [vmem:[#allocation2] sm:$0xff] 0.0
      %47 = vst [vmem:[#allocation2 + $0x8] sm:$0xff] 0.0
    $region25: #{_lambda_.1} parent=1 // pred_fallthru
      _
    %v48 = vld [vmem:[#allocation2] sm:$0xff]
    %v49 = vld [vmem:[#allocation2 + $0x8] sm:$0xff]
    %v50 = vld [vmem:[#allocation3] sm:$0xff]
    %v51 = vld [vmem:[#allocation3 + $0x8] sm:$0xff]
    %v52 = vld [vmem:[#allocation5] sm:$0xff]
    %v53 = vld [vmem:[#allocation5 + $0x8] sm:$0xff]
    %v54 = vld [vmem:[#allocation5 + $0x10] sm:$0xff]
    %v55 = vld [vmem:[#allocation5 + $0x18] sm:$0xff]
    %vm56 = vcmask 261120
    %v58 = vsel %vm56, %v50, 0
    %v61 = vsel %vm56, %v51, 0
    %63 = vmatprep.subr.mxu0 0.0
    %64 = vmatpush1.msra.mxu0 %v52
    %65 = vmatprep.subr.mxu0 0.0
    %66 = vmatpush1.msra.mxu0 %v53
    %67 = vmatprep.subr.mxu0 0.0
    %68 = vmatpush1.msra.mxu0 %v54
    %69 = vmatprep.subr.mxu0 0.0
    %70 = vmatpush1.msra.mxu0 %v55
    %71 = vmatprep.subr.mxu0 0.0
    %72 = vmatpush1.msra.mxu0 0.0
    %73 = vmatprep.subr.mxu0 0.0
    %74 = vmatpush1.msra.mxu0 0.0
    %75 = vmatprep.subr.mxu0 0.0
    %76 = vmatpush1.msra.mxu0 0.0
    %77 = vmatprep.subr.mxu0 0.0
    %78 = vmatpush1.msra.mxu0 0.0
    %79 = vmatprep.subr.mxu0 0.0
    %80 = vmatpush1.msra.mxu0 0.0
    %81 = vmatprep.subr.mxu0 0.0
    %82 = vmatpush1.msra.mxu0 0.0
    %83 = vmatprep.subr.mxu0 0.0
    %84 = vmatpush1.msra.mxu0 0.0
    %85 = vmatprep.subr.mxu0 0.0
    %86 = vmatpush1.msra.mxu0 0.0
    %87 = vmatprep.subr.mxu0 0.0
    %88 = vmatpush1.msra.mxu0 0.0
    %89 = vmatprep.subr.mxu0 0.0
    %90 = vmatpush1.msra.mxu0 0.0
    %91 = vmatprep.subr.mxu0 0.0
    %92 = vmatpush1.msra.mxu0 0.0
    %93 = vmatprep.subr.mxu0 0.0
    %94 = vmatpush1.msra.mxu0 0.0
    %95 = vmatprep.subr.mxu0 0.0
    %96 = vmatpush1.msra.mxu0 0.0
    %97 = vmatprep.subr.mxu0 0.0
    %98 = vmatpush1.msra.mxu0 0.0
    %99 = vmatprep.subr.mxu0 0.0
    %100 = vmatpush1.msra.mxu0 0.0
    %101 = vmatprep.subr.mxu0 0.0
    %102 = vmatpush1.msra.mxu0 0.0
    %103 = vmatprep.subr.mxu0 0.0
    %104 = vmatpush1.msra.mxu0 0.0
    %105 = vmatprep.subr.mxu0 0.0
    %106 = vmatpush1.msra.mxu0 0.0
    %107 = vmatprep.subr.mxu0 0.0
    %108 = vmatpush1.msra.mxu0 0.0
    %109 = vmatprep.subr.mxu0 0.0
    %110 = vmatpush1.msra.mxu0 0.0
    %111 = vmatprep.subr.mxu0 0.0
    %112 = vmatpush1.msra.mxu0 0.0
    %113 = vmatprep.subr.mxu0 0.0
    %114 = vmatpush1.msra.mxu0 0.0
    %115 = vmatprep.subr.mxu0 0.0
    %116 = vmatpush1.msra.mxu0 0.0
    %117 = vmatprep.subr.mxu0 0.0
    %118 = vmatpush1.msra.mxu0 0.0
    %119 = vmatprep.subr.mxu0 0.0
    %120 = vmatpush1.msra.mxu0 0.0
    %121 = vmatprep.subr.mxu0 0.0
    %122 = vmatpush1.msra.mxu0 0.0
    %123 = vmatprep.subr.mxu0 0.0
    %124 = vmatpush1.msra.mxu0 0.0
    %125 = vmatprep.subr.mxu0 0.0
    %126 = vmatpush1.msra.mxu0 0.0
    %127 = vmatprep.mubr.f32.mxu0 0.0
    %128 = vmatmul.mubr.f32.gmra.mrb[0].mxu0 %v58
    %v129 = vpop.f32.mrb[0].mxu0
    %v130 = vadd.f32 0.0, %v129
    %v131 = vpop.f32.mrb[0].mxu0
    %132 = vmatprep.mubr.f32.mxu0 0.0
    %133 = vmatmul.mubr.f32.gmra.mrb[0].mxu0 %v61
    %v134 = vpop.f32.mrb[0].mxu0
    %v135 = vadd.f32 0.0, %v134
    %v136 = vpop.f32.mrb[0].mxu0
    %137 = vdwg.mxu0
    %v138 = vadd.f32 %v48, %v130
    %v139 = vadd.f32 %v49, %v135
    %140 = vst [vmem:[#allocation2] sm:$0xff] %v138
    %141 = vst [vmem:[#allocation2 + $0x8] sm:$0xff] %v139
    // Predicated region
    $region26: #{_lambda_.1} parent=1 // pred_check
      %p142 = pneg %p42
    $region27: #{_lambda_.1} parent=1 // pred_check_branch
      %144 = sbr.rel (%p142) target = $region29
    $region28: #{_lambda_.1} parent=1 // pred_region
      %v145 = vld [vmem:[#allocation2] sm:$0xff]
      %v146 = vld [vmem:[#allocation2 + $0x8] sm:$0xff]
      %v147 = vld [vmem:[%s2] sm:$0x1]
      %v149 = vlaneseq
      %v150 = vshrl.u32 %v149, 7
      %v151 = vsub.s32 0, %v150
      %v152 = vrot.slane %v147, %v151
      %v154 = vadd.f32 %v145, %v152
      %v155 = vadd.f32 %v146, %v152
      %156 = vst [vmem:[#allocation2] sm:$0xff] %v154
      %157 = vst [vmem:[#allocation2 + $0x8] sm:$0xff] %v155
      %v158 = vld [vmem:[#allocation2] sm:$0xff]
      %v159 = vld [vmem:[#allocation2 + $0x8] sm:$0xff]
      %160 = vmax.xlane.f32.xlu0 %v158
      %v161 = vpop.xlane.xlu0 %160
      %162 = vmax.xlane.f32.xlu0 %v159
      %v163 = vpop.xlane.xlu0 %162
      %v164 = vsub.f32 %v158, %v161
      %v165 = vsub.f32 %v159, %v163
      %v166 = vmul.f32 %v164, 1.442695
      %v167 = vpow.pop %v166
      %v168 = vmul.f32 %v165, 1.442695
      %v169 = vpow.pop %v168
      %170 = vadd.xlane.f32.xlu0 %v167
      %v171 = vpop.xlane.xlu0 %170
      %172 = vadd.xlane.f32.xlu0 %v169
      %v173 = vpop.xlane.xlu0 %172
      %v174 = vlog2.pop %v171
      %v175 = vmul.f32 %v174, 0.6931472
      %v176 = vlog2.pop %v173
      %v177 = vmul.f32 %v176, 0.6931472
      %v178 = vsub.f32 %v164, %v175
      %v179 = vsub.f32 %v165, %v177
      %180 = vst [vmem:[%s3] sm:$0xff] %v178
      %181 = vst [vmem:[%s3 + $0x8] sm:$0xff] %v179
    $region29: #{_lambda_.1} parent=1 // pred_fallthru
      _
    // Predicated region
    $region30: #{_lambda_.1} parent=1 // pred_check
      _
    $region31: #{_lambda_.1} parent=1 // pred_check_branch
      %183 = sbr.rel (0) target = $region33
    $region32: #{_lambda_.1} parent=1 // pred_region
      _
    $region33: #{_lambda_.1} parent=1 // pred_fallthru
      _
    // Predicated region
    $region34: #{_lambda_.1} parent=1 // pred_check
      _
    $region35: #{_lambda_.1} parent=1 // pred_check_branch
      %185 = sbr.rel (0) target = $region37
    $region36: #{_lambda_.1} parent=1 // pred_region
      _
    $region37: #{_lambda_.1} parent=1 // pred_fallthru
      _
    %186 = vsyncpa [#allocation4], 1
    %187 = vsyncpa [#allocation6], 1

</llo_original>
